<compile_context>
chip_gen: v7x
topology: tpu7x:2x2x1
jax: 0.10.0
libtpu: 0.0.40
codegen_flags: <defaults>
</compile_context>

<pallas_src>
import jax
import jax.numpy as jnp
from jax.experimental import pallas as pl
from jax.experimental.pallas import tpu as pltpu


def _round_up(x, m):
    return (x + m - 1) // m * m


# ----------------------------- Pallas kernel ------------------------------ #
def _fused_head_kernel(x_ref, w_ref, b_ref, o_ref):
    # x_ref: [C_in, tn]   (bf16)  -- one batch element, one spatial tile
    # w_ref: [C_out, C_in](bf16)  -- all three heads, concatenated along C_out
    # b_ref: [C_out, 1]   (f32)
    # o_ref: [C_out, tn]  (f32)   -- lane-dense stores along the spatial axis
    acc = jnp.dot(w_ref[...], x_ref[...], preferred_element_type=jnp.float32)
    o_ref[...] = (acc + b_ref[...]).astype(o_ref.dtype)


def fused_pointwise_conv(x_bc_hw, w, b, *, tn=None, compute_dtype=jnp.bfloat16):
    """Fused 1x1-conv over channels in NCHW orientation.

    x_bc_hw: [B, C_in, HW] f32, w: [C_out, C_in] f32, b: [C_out] f32
    returns  [B, C_out, HW] f32 (NCHW channel order).
    """
    B, C_in, HW = x_bc_hw.shape
    C_out = w.shape[0]

    # Spatial (lane) tile: as large as reasonable, multiple of 128; pad HW.
    if tn is None:
        tn = min(512, _round_up(HW, 128))
    tn = _round_up(tn, 128)
    HW_pad = _round_up(HW, tn)

    x = x_bc_hw.astype(compute_dtype)
    if HW_pad != HW:
        x = jnp.pad(x, ((0, 0), (0, 0), (0, HW_pad - HW)))
    w_c = w.astype(compute_dtype)
    b2 = b.reshape(C_out, 1).astype(jnp.float32)

    grid = (B, HW_pad // tn)

    flops = 2 * B * HW_pad * C_in * C_out
    bytes_accessed = (
        x.size * x.dtype.itemsize
        + w_c.size * w_c.dtype.itemsize
        + b2.size * b2.dtype.itemsize
        + B * C_out * HW_pad * 4
    )

    y = pl.pallas_call(
        _fused_head_kernel,
        out_shape=jax.ShapeDtypeStruct((B, C_out, HW_pad), jnp.float32),
        grid_spec=pltpu.PrefetchScalarGridSpec(
            num_scalar_prefetch=0,
            grid=grid,
            in_specs=[
                # streaming input: one batch, one spatial tile (lane axis = HW)
                pl.BlockSpec((pl.Squeezed(), C_in, tn), lambda bi, j: (bi, 0, j)),
                # weights / bias stay resident (constant block index)
                pl.BlockSpec((C_out, C_in), lambda bi, j: (0, 0)),
                pl.BlockSpec((C_out, 1), lambda bi, j: (0, 0)),
            ],
            out_specs=pl.BlockSpec((pl.Squeezed(), C_out, tn),
                                   lambda bi, j: (bi, 0, j)),
        ),
        compiler_params=pltpu.CompilerParams(
            dimension_semantics=("parallel", "parallel"),
        ),
        cost_estimate=pl.CostEstimate(
            flops=flops, transcendentals=0, bytes_accessed=bytes_accessed),
    )(x, w_c, b2)

    if HW_pad != HW:
        y = y[:, :, :HW]
    return y


# ------------------------------ DefaultHead ------------------------------- #
class DefaultHeadPallas:
    def __init__(self, num_filters, num_class, num_anchor_per_loc,
                 box_code_size, num_direction_bins, use_direction_classifier,
                 encode_background_as_zeros, key):
        self._num_anchor_per_loc = num_anchor_per_loc
        self._num_direction_bins = num_direction_bins
        self._num_class = num_class
        self._use_direction_classifier = use_direction_classifier
        self._box_code_size = box_code_size

        if encode_background_as_zeros:
            num_cls = num_anchor_per_loc * num_class
        else:
            num_cls = num_anchor_per_loc * (num_class + 1)
        num_box = num_anchor_per_loc * box_code_size
        num_dir = num_anchor_per_loc * num_direction_bins

        self.num_cls = num_cls
        self.num_box = num_box
        self.num_dir = num_dir

        # Deterministic synthetic parameters.  Conv2d 1x1 weights are stored in
        # the PyTorch orientation [C_out, C_in] (kernel dims squeezed).
        k = iter(jax.random.split(key, 6))
        scale = 0.1
        self.w_cls = scale * jax.random.normal(next(k), (num_cls, num_filters), jnp.float32)
        self.b_cls = scale * jax.random.normal(next(k), (num_cls,), jnp.float32)
        self.w_box = scale * jax.random.normal(next(k), (num_box, num_filters), jnp.float32)
        self.b_box = scale * jax.random.normal(next(k), (num_box,), jnp.float32)
        if use_direction_classifier:
            self.w_dir = scale * jax.random.normal(next(k), (num_dir, num_filters), jnp.float32)
            self.b_dir = scale * jax.random.normal(next(k), (num_dir,), jnp.float32)

    def __call__(self, x_nchw):
        B, C_in, H, W = x_nchw.shape
        A = self._num_anchor_per_loc

        # Fuse all heads along the output-channel axis (box | cls | dir).
        if self._use_direction_classifier:
            w_all = jnp.concatenate([self.w_box, self.w_cls, self.w_dir], axis=0)
            b_all = jnp.concatenate([self.b_box, self.b_cls, self.b_dir], axis=0)
        else:
            w_all = jnp.concatenate([self.w_box, self.w_cls], axis=0)
            b_all = jnp.concatenate([self.b_box, self.b_cls], axis=0)

        # NCHW stays NCHW: just flatten spatial (no transpose pass).
        x3 = x_nchw.reshape(B, C_in, H * W)
        y = fused_pointwise_conv(x3, w_all, b_all)       # [B, C_out_total, H*W]
        y = y.reshape(B, -1, H, W)                       # NCHW channel order

        box_nchw = y[:, : self.num_box]
        cls_nchw = y[:, self.num_box: self.num_box + self.num_cls]

        def to_final(t_nchw, k_per_anchor, k_final):
            # [B, A*K, H, W] -> [B, A, K, H, W] -> [B, A, H, W, K] -> [B, -1, k_final]
            t = t_nchw.reshape(B, A, k_per_anchor, H, W)
            t = jnp.transpose(t, (0, 1, 3, 4, 2))
            return t.reshape(B, -1, k_final)

        ret = {
            "box_preds": to_final(box_nchw, self._box_code_size, self._box_code_size),
            # channels-per-anchor may be num_class+1 when background is not
            # encoded as zeros; final view still uses num_class like PyTorch.
            "cls_preds": to_final(cls_nchw, self.num_cls // A, self._num_class),
        }
        if self._use_direction_classifier:
            dir_nchw = y[:, self.num_box + self.num_cls:]
            ret["dir_cls_preds"] = to_final(
                dir_nchw, self._num_direction_bins, self._num_direction_bins)
        return ret


# -------------------------------- main ------------------------------------ #
if __name__ == "__main__":
    key = jax.random.PRNGKey(0)
    k_x, k_p = jax.random.split(key)

    # Small shapes consistent with the module's forward.
    B, C_in, H, W = 2, 32, 16, 16
    num_class = 4
    num_anchor_per_loc = 2
    box_code_size = 7
    num_direction_bins = 2

    x = jax.random.normal(k_x, (B, C_in, H, W), jnp.float32)  # NCHW, like PyTorch

    head = DefaultHeadPallas(
        num_filters=C_in,
        num_class=num_class,
        num_anchor_per_loc=num_anchor_per_loc,
        box_code_size=box_code_size,
        num_direction_bins=num_direction_bins,
        use_direction_classifier=True,
        encode_background_as_zeros=True,
        key=k_p,
    )

    out = head(x)
    jax.block_until_ready(out)

    # Reference: plain-JAX 1x1 conv (NCHW) + the module's reshape/permute.
    def ref_head(x_nchw, w, b, A, K):
        # w: [C_out, C_in];  out[b, d, h, w] = sum_c x[b, c, h, w] * w[d, c] + b[d]
        o = jnp.einsum("bchw,dc->bdhw", x_nchw, w) + b[None, :, None, None]
        Bq, _, Hq, Wq = o.shape
        return o.reshape(Bq, A, K, Hq, Wq).transpose(0, 1, 3, 4, 2).reshape(Bq, -1, K)

    # (1) tight check against the same-precision (bf16-rounded input) reference.
    xr = x.astype(jnp.bfloat16).astype(jnp.float32)
    rw = lambda w: w.astype(jnp.bfloat16).astype(jnp.float32)
    assert jnp.allclose(out["box_preds"],
                        ref_head(xr, rw(head.w_box), head.b_box, num_anchor_per_loc, box_code_size),
                        atol=2e-3, rtol=2e-3)
    assert jnp.allclose(out["cls_preds"],
                        ref_head(xr, rw(head.w_cls), head.b_cls, num_anchor_per_loc, num_class),
                        atol=2e-3, rtol=2e-3)
    assert jnp.allclose(out["dir_cls_preds"],
                        ref_head(xr, rw(head.w_dir), head.b_dir, num_anchor_per_loc, num_direction_bins),
                        atol=2e-3, rtol=2e-3)

    # (2) loose check against the original full-f32 module semantics.
    assert jnp.allclose(out["box_preds"],
                        ref_head(x, head.w_box, head.b_box, num_anchor_per_loc, box_code_size),
                        atol=5e-2, rtol=5e-2)
    assert jnp.allclose(out["cls_preds"],
                        ref_head(x, head.w_cls, head.b_cls, num_anchor_per_loc, num_class),
                        atol=5e-2, rtol=5e-2)
    assert jnp.allclose(out["dir_cls_preds"],
                        ref_head(x, head.w_dir, head.b_dir, num_anchor_per_loc, num_direction_bins),
                        atol=5e-2, rtol=5e-2)

    assert out["box_preds"].shape == (B, num_anchor_per_loc * H * W, box_code_size)
    assert out["cls_preds"].shape == (B, num_anchor_per_loc * H * W, num_class)
    assert out["dir_cls_preds"].shape == (B, num_anchor_per_loc * H * W, num_direction_bins)

    print("KERNEL_OK")
</pallas_src>

<mosaic_0001>
module attributes {stable_mosaic.version = 11 : i64} {
  func.func @_fused_head_kernel(%arg0: i32, %arg1: i32, %arg2: memref<1x32x256xbf16, #tpu.memory_space<vmem>>, %arg3: memref<26x32xbf16, #tpu.memory_space<vmem>>, %arg4: memref<26x1xf32, #tpu.memory_space<vmem>>, %arg5: memref<1x26x256xf32, #tpu.memory_space<vmem>>) attributes {dimension_semantics = [#tpu.dimension_semantics<parallel>, #tpu.dimension_semantics<parallel>], iteration_bounds = array<i64: 2, 1>, scalar_prefetch = 0 : i64, scratch_operands = 0 : i64, tpu.core_type = #tpu.core_type<tc>, window_params = [{transform_indices = @transform_0, window_bounds = array<i64: 1, 32, 256>}, {pipeline_mode = #tpu.pipeline_mode<synchronous>, transform_indices = @transform_1, window_bounds = array<i64: 26, 32>}, {pipeline_mode = #tpu.pipeline_mode<synchronous>, transform_indices = @transform_2, window_bounds = array<i64: 26, 1>}, {transform_indices = @transform_3, window_bounds = array<i64: 1, 26, 256>}]} {
    %c0 = arith.constant 0 : index
    %c0_0 = arith.constant 0 : index
    %0 = vector.load %arg3[%c0, %c0_0] : memref<26x32xbf16, #tpu.memory_space<vmem>>, vector<26x32xbf16>
    %c0_1 = arith.constant 0 : index
    %c0_2 = arith.constant 0 : index
    %c0_3 = arith.constant 0 : index
    %1 = vector.load %arg2[%c0_1, %c0_2, %c0_3] : memref<1x32x256xbf16, #tpu.memory_space<vmem>>, vector<1x32x256xbf16>
    %2 = vector.shape_cast %1 : vector<1x32x256xbf16> to vector<32x256xbf16>
    %cst = arith.constant dense<0.000000e+00> : vector<26x256xf32>
    %3 = tpu.matmul %0, %2, %cst {dimension_numbers = #tpu.dot_dimension_numbers<[1], [0], [0], [1], [0, 0, 1, 1], [], []>} : vector<26x32xbf16>, vector<32x256xbf16>, vector<26x256xf32> -> vector<26x256xf32>
    %c0_4 = arith.constant 0 : index
    %c0_5 = arith.constant 0 : index
    %4 = vector.load %arg4[%c0_4, %c0_5] : memref<26x1xf32, #tpu.memory_space<vmem>>, vector<26x1xf32>
    %5 = vector.broadcast %4 : vector<26x1xf32> to vector<26x256xf32>
    %6 = arith.addf %3, %5 : vector<26x256xf32>
    %c0_6 = arith.constant 0 : index
    %c0_7 = arith.constant 0 : index
    %c0_8 = arith.constant 0 : index
    %7 = vector.load %arg5[%c0_6, %c0_7, %c0_8] : memref<1x26x256xf32, #tpu.memory_space<vmem>>, vector<1x26x256xf32>
    %8 = vector.shape_cast %7 : vector<1x26x256xf32> to vector<26x256xf32>
    %9 = vector.shape_cast %6 : vector<26x256xf32> to vector<1x26x256xf32>
    tpu.vector_store %arg5[%c0_6, %c0_7, %c0_8], %9 {strides = array<i32>} : memref<1x26x256xf32, #tpu.memory_space<vmem>>, vector<1x26x256xf32>,
    return
  }
  func.func @transform_0(%arg0: i32, %arg1: i32) -> (i32, i32, i32) {
    %c0_i32 = arith.constant 0 : i32
    %c0_i32_0 = arith.constant 0 : i32
    return %arg0, %c0_i32, %arg1 : i32, i32, i32
  }
  func.func @transform_1(%arg0: i32, %arg1: i32) -> (i32, i32) {
    %c0_i32 = arith.constant 0 : i32
    %c0_i32_0 = arith.constant 0 : i32
    %c0_i32_1 = arith.constant 0 : i32
    return %c0_i32, %c0_i32_0 : i32, i32
  }
  func.func @transform_2(%arg0: i32, %arg1: i32) -> (i32, i32) {
    %c0_i32 = arith.constant 0 : i32
    %c0_i32_0 = arith.constant 0 : i32
    %c0_i32_1 = arith.constant 0 : i32
    return %c0_i32, %c0_i32_0 : i32, i32
  }
  func.func @transform_3(%arg0: i32, %arg1: i32) -> (i32, i32, i32) {
    %c0_i32 = arith.constant 0 : i32
    %c0_i32_0 = arith.constant 0 : i32
    return %arg0, %c0_i32, %arg1 : i32, i32, i32
  }
}

</mosaic_0001>

<llo_original>
// kernel: tpu_custom_call.1
$region0: #{tpu_custom_call.1}
  #allocation0 [shape = 'u32[]', space=smem, size = 0x4, offset = 0x4, fixed_abs, tag = 'smem constant byte address 0x4 - core index']
  #allocation1 [shape = 'u32[144,128]{1,0:T(1,128)}', space=vmem, size = 0x12000, scoped, tag = 'internal scratch']
  %s0 = inlined_call_operand.hbm [shape: bf16[2,32,256], index: 0, kind: input, shape index: {}]
  %s1 = inlined_call_operand.vmem [shape: bf16[26,32], index: 1, kind: input, shape index: {}]
  %s2 = inlined_call_operand.vmem [shape: f32[26,1], index: 2, kind: input, shape index: {}]
  %s3 = inlined_call_operand.vmem [shape: f32[2,26,256], index: 3, kind: output, shape index: {}]
  %s4 = sld [smem:[#allocation0]]
  $region49: #{tpu_custom_call.1} parent=0
    _
  %s6 = ssub.s32 1, %s4
  %s7 = scalar_select 0, %s6, %s4
  $region1: #{tpu_custom_call.1} parent=0
    #allocation2 [shape = 'u8[32768]{0}', space=vmem, size = 0x8000, scoped, tag = 'input window, operand 0']
    #allocation3 [shape = 's32[2]{0}', space=sflag, size = 0x8, scoped, tag = 'scoped memory for tpu_custom_call.1']
    %8 = vsyncpa [#allocation3], 0
    %s9 = scalar_lea.sflag [#allocation3], 1
    %10 = vsyncpa %s9, 0
    loop: start=0, step=1, limit=4
    $region2: #{tpu_custom_call.1} parent=1 // loop_pre_header
      _
    $region3: #{tpu_custom_call.1} parent=1 // loop_header
      %s12 = sphi 0, %s16
      %p13 = scmp.ge.s32.totalorder %s12, 4
      %s19 = sphi 0, %s31
      %s20 = sphi 0, %s27
      %s21 = sphi 0, %s19
      %s22 = sphi 0, %s20
      %s23 = sphi 0, %s21
      %s24 = sphi 0, %s22
      %s36 = sphi 0, %s38
      %s39 = sphi 0, %s36
      %s40 = sphi 0, %s39
      %s56 = sphi 0, %s40
      %s60 = sphi 0, %s60
      %s62 = sphi 0, %s60
      %s63 = sphi 0, %s62
      %s77 = sphi 0, %s63
      %s81 = sphi 0, %s81
      %s83 = sphi 0, %s81
      %s84 = sphi 0, %s83
      %s98 = sphi 0, %s84
      %s106 = sphi 0, %s108
      %s109 = sphi 0, %s106
      %s110 = sphi 0, %s109
      %s126 = sphi 0, %s110
    $region4: #{tpu_custom_call.1} parent=1 // loop_header_branch
      %15 = sbr.rel (%p13) target = $region8
    $region5: #{tpu_custom_call.1} parent=1 // loop_body
      %s17 = ssub.s32 %s12, 1
      %s18 = ssub.s32 %s12, 2
      %s25 = sadd.s32 1, %s20
      %p26 = scmp.ge.s32.totalorder %s25, 1
      %s27 = scalar_select %p26, 0, %s25
      %s28 = sadd.s32 1, %s19
      %s29 = scalar_select %p26, %s28, %s19
      %p30 = scmp.ge.s32.totalorder %s29, 2
      %s31 = scalar_select %p30, 0, %s29
      %s32 = ssub.s32 %s19, %s31
      %s33 = ssub.s32 %s20, %s27
      %s34 = sor.u32 %s32, %s33
      %p35 = scmp.eq.s32.totalorder %s34, 0
      %s37 = sadd.s32 %s36, 1
      %s38 = scalar_select %p35, %s36, %s37
      %p41 = pneg %p35
      %p42 = scmp.eq.s32.totalorder %s12, 1
      %p43 = por %p41, %p42
      %p44 = scmp.ne.s32.totalorder %s36, %s39
      %p45 = scmp.eq.s32.totalorder %s12, 0
      %p46 = por %p44, %p45
      %p47 = scmp.ne.s32.totalorder %s36, %s39
      %p48 = scmp.eq.s32.totalorder %s17, 1
      %p49 = por %p47, %p48
      %p50 = scmp.ne.s32.totalorder %s39, %s40
      %p51 = scmp.eq.s32.totalorder %s17, 0
      %p52 = por %p50, %p51
      %p53 = scmp.ne.s32.totalorder %s39, %s40
      %p54 = scmp.eq.s32.totalorder %s18, 1
      %p55 = por %p53, %p54
      %p57 = scmp.ne.s32.totalorder %s40, %s56
      %p58 = scmp.eq.s32.totalorder %s18, 0
      %p59 = por %p57, %p58
      %s61 = sadd.s32 %s60, 1
      %p64 = scmp.eq.s32.totalorder %s12, 1
      %p65 = scmp.ne.s32.totalorder %s60, %s62
      %p66 = scmp.eq.s32.totalorder %s12, 0
      %p67 = por %p65, %p66
      %p68 = scmp.ne.s32.totalorder %s60, %s62
      %p69 = scmp.eq.s32.totalorder %s17, 1
      %p70 = por %p68, %p69
      %p71 = scmp.ne.s32.totalorder %s62, %s63
      %p72 = scmp.eq.s32.totalorder %s17, 0
      %p73 = por %p71, %p72
      %p74 = scmp.ne.s32.totalorder %s62, %s63
      %p75 = scmp.eq.s32.totalorder %s18, 1
      %p76 = por %p74, %p75
      %p78 = scmp.ne.s32.totalorder %s63, %s77
      %p79 = scmp.eq.s32.totalorder %s18, 0
      %p80 = por %p78, %p79
      %s82 = sadd.s32 %s81, 1
      %p85 = scmp.eq.s32.totalorder %s12, 1
      %p86 = scmp.ne.s32.totalorder %s81, %s83
      %p87 = scmp.eq.s32.totalorder %s12, 0
      %p88 = por %p86, %p87
      %p89 = scmp.ne.s32.totalorder %s81, %s83
      %p90 = scmp.eq.s32.totalorder %s17, 1
      %p91 = por %p89, %p90
      %p92 = scmp.ne.s32.totalorder %s83, %s84
      %p93 = scmp.eq.s32.totalorder %s17, 0
      %p94 = por %p92, %p93
      %p95 = scmp.ne.s32.totalorder %s83, %s84
      %p96 = scmp.eq.s32.totalorder %s18, 1
      %p97 = por %p95, %p96
      %p99 = scmp.ne.s32.totalorder %s84, %s98
      %p100 = scmp.eq.s32.totalorder %s18, 0
      %p101 = por %p99, %p100
      %s102 = ssub.s32 %s19, %s31
      %s103 = ssub.s32 %s20, %s27
      %s104 = sor.u32 %s102, %s103
      %p105 = scmp.eq.s32.totalorder %s104, 0
      %s107 = sadd.s32 %s106, 1
      %s108 = scalar_select %p105, %s106, %s107
      %p111 = pneg %p105
      %p112 = scmp.eq.s32.totalorder %s12, 1
      %p113 = por %p111, %p112
      %p114 = scmp.ne.s32.totalorder %s106, %s109
      %p115 = scmp.eq.s32.totalorder %s12, 0
      %p116 = por %p114, %p115
      %p117 = scmp.ne.s32.totalorder %s106, %s109
      %p118 = scmp.eq.s32.totalorder %s17, 1
      %p119 = por %p117, %p118
      %p120 = scmp.ne.s32.totalorder %s109, %s110
      %p121 = scmp.eq.s32.totalorder %s17, 0
      %p122 = por %p120, %p121
      %p123 = scmp.ne.s32.totalorder %s109, %s110
      %p124 = scmp.eq.s32.totalorder %s18, 1
      %p125 = por %p123, %p124
      %p127 = scmp.ne.s32.totalorder %s110, %s126
      %p128 = scmp.eq.s32.totalorder %s18, 0
      %p129 = por %p127, %p128
      %p130 = scmp.le.s32.totalorder 1, %s12
      %p131 = scmp.lt.s32.totalorder %s12, 3
      %p132 = pnand %p130, %p131
      %p133 = pneg %p132
      // Predicated region
      $region9: #{tpu_custom_call.1} parent=5 // pred_check
        _
      $region10: #{tpu_custom_call.1} parent=5 // pred_check_branch
        %135 = sbr.rel (%p132) target = $region12
      $region11: #{tpu_custom_call.1} parent=5 // pred_region
        %s136 = ssub.s32 %s12, 1
        // Predicated region
        $region13: #{tpu_custom_call.1} parent=11 // pred_check
          %p137 = pneg %p73
        $region14: #{tpu_custom_call.1} parent=11 // pred_check_branch
          %139 = sbr.rel (%p137) target = $region16
        $region15: #{tpu_custom_call.1} parent=11 // pred_region
          _
        $region16: #{tpu_custom_call.1} parent=11 // pred_fallthru
          _
        // Predicated region
        $region17: #{tpu_custom_call.1} parent=11 // pred_check
          %p140 = pneg %p94
        $region18: #{tpu_custom_call.1} parent=11 // pred_check_branch
          %142 = sbr.rel (%p140) target = $region20
        $region19: #{tpu_custom_call.1} parent=11 // pred_region
          _
        $region20: #{tpu_custom_call.1} parent=11 // pred_fallthru
          _
      $region12: #{tpu_custom_call.1} parent=5 // pred_fallthru
        _
      %p143 = scmp.lt.s32.totalorder %s12, 2
      // Predicated region
      $region21: #{tpu_custom_call.1} parent=5 // pred_check
        %p144 = pneg %p143
      $region22: #{tpu_custom_call.1} parent=5 // pred_check_branch
        %146 = sbr.rel (%p144) target = $region24
      $region23: #{tpu_custom_call.1} parent=5 // pred_region
        // Predicated region
        $region25: #{tpu_custom_call.1} parent=23 // pred_check
          %p147 = pneg %p46
        $region26: #{tpu_custom_call.1} parent=23 // pred_check_branch
          %149 = sbr.rel (%p147) target = $region28
        $region27: #{tpu_custom_call.1} parent=23 // pred_region
          %s150 = sand.u32 %s36, 1
          %s151 = scalar_lea.sflag [#allocation3], %s150
          %s152 = sand.u32 %s36, 1
          %s153 = smul.addr %s152, 32
          %s154 = scalar_lea.vmem [#allocation2], %s153
          %s155 = smul.u32 2, %s20
          %s157 = ssub.s32 512, 512
          %158 = vsyncadd %s151, %s157
          %s159 = smul.addr %s19, 8
          %s160 = sadd.s32 %s155, %s159
          %s161 = smul.addr %s160, 64
          %s162 = scalar_lea.hbm %s0, %s161
          %s163 = sshll.u32 %s154, 4
          %s164 = int_to_ptr.vmem [resolvable:$true] %s163
          %169 = dma.hbm_to_vmem [thread:$0]  %s162, 512, %s164, %s151, 128, 128, 8
        $region28: #{tpu_custom_call.1} parent=23 // pred_fallthru
          _
      $region24: #{tpu_custom_call.1} parent=5 // pred_fallthru
        _
      %p170 = scmp.le.s32.totalorder 1, %s12
      %p171 = scmp.lt.s32.totalorder %s12, 3
      %p172 = pnand %p170, %p171
      %p173 = pneg %p172
      // Predicated region
      $region29: #{tpu_custom_call.1} parent=5 // pred_check
        _
      $region30: #{tpu_custom_call.1} parent=5 // pred_check_branch
        %175 = sbr.rel (%p172) target = $region32
      $region31: #{tpu_custom_call.1} parent=5 // pred_region
        %s176 = ssub.s32 %s12, 1
        %s177 = sand.u32 %s39, 1
        %s178 = scalar_lea.sflag [#allocation3], %s177
        %s179 = sand.u32 %s39, 1
        %s180 = smul.addr %s179, 32
        %s181 = scalar_lea.vmem [#allocation2], %s180
        // Predicated region
        $region33: #{tpu_custom_call.1} parent=31 // pred_check
          %p182 = pneg %p52
        $region34: #{tpu_custom_call.1} parent=31 // pred_check_branch
          %184 = sbr.rel (%p182) target = $region36
        $region35: #{tpu_custom_call.1} parent=31 // pred_region
          %185 = dma.done %s178, 512
        $region36: #{tpu_custom_call.1} parent=31 // pred_fallthru
          _
        %s186 = sand.u32 %s39, 1
        %s187 = scalar_lea.sflag [#allocation3], %s186
        %s188 = sand.u32 %s39, 1
        %s189 = smul.addr %s188, 32
        %s190 = scalar_lea.vmem [#allocation2], %s189
        %p191 = pneg %p52
        %p192 = pneg %p49
        %p193 = pneg %p73
        %p194 = pneg %p70
        %p195 = pneg %p94
        %p196 = pneg %p91
        %p197 = pneg %p122
        %p198 = pneg %p119
        %s199 = smul.u32 2, %s22
        %p200 = scmp.lt.s32.totalorder %s21, 1
        %s201 = scalar_select %p200, %s21, 1
        %p202 = scmp.lt.s32.totalorder %s199, 1
        %s203 = scalar_select %p202, %s199, 1
        %s204 = smul.addr %s201, 8
        %s205 = sadd.s32 %s203, %s204
        %s206 = smul.addr %s205, 8
        %s207 = scalar_lea.vmem %s3, %s206
        %s208 = smul.u32 2, %s22
        %s209 = smul.u32 2, %s22
        %p210 = scmp.lt.s32.totalorder %s21, 1
        %s211 = scalar_select %p210, %s21, 1
        %p212 = scmp.lt.s32.totalorder %s209, 1
        %s213 = scalar_select %p212, %s209, 1
        %s214 = smul.addr %s211, 8
        %s215 = sadd.s32 %s213, %s214
        %s216 = smul.addr %s215, 8
        %s217 = scalar_lea.vmem %s3, %s216
        %s218 = smul.u32 2, %s22
        %v220 = vld [vmem:[%s1] sm:$0xf]
        %v221 = vld [vmem:[%s1 + $0x4] sm:$0xf]
        %v222 = vld [vmem:[%s1 + $0x8] sm:$0xf]
        %v223 = vld [vmem:[%s1 + $0xc] sm:$0x1]
        %v224 = vld [vmem:[%s181] sm:$0xff]
        %v225 = vld [vmem:[%s181 + $0x8] sm:$0xff]
        %v226 = vld [vmem:[%s181 + $0x10] sm:$0xff]
        %v227 = vld [vmem:[%s181 + $0x18] sm:$0xff]
        %v228 = vld [vmem:[%s2] sm:$0xff]
        %v229 = vld [vmem:[%s2 + $0x8] sm:$0xff]
        %v230 = vld [vmem:[%s2 + $0x10] sm:$0xff]
        %v231 = vld [vmem:[%s2 + $0x18] sm:$0x3]
        %233 = vset.pattern.permute.xlu0 0
        %234 = vperm.xlu0 %233, %v228
        %v235 = vpop.permute.xlu0 %234
        %238 = vset.pattern.permute.xlu0 0
        %239 = vperm.xlu0 %238, %v229
        %v240 = vpop.permute.xlu0 %239
        %243 = vset.pattern.permute.xlu0 0
        %244 = vperm.xlu0 %243, %v230
        %v245 = vpop.permute.xlu0 %244
        %248 = vset.pattern.permute.xlu0 0
        %249 = vperm.xlu0 %248, %v231
        %v250 = vpop.permute.xlu0 %249
        %v256 = vunpack.c.l.b16 %v220
        %v257 = vunpack.c.l.b16 %v221
        %v258 = vunpack.c.l.b16 %v222
        %v259 = vunpack.c.l.b16 %v223
        %v260 = vpack.c.b16 %v257, %v256
        %v261 = vpack.c.b16 %v259, %v258
        %v266 = vunpack.c.l.b16 %v224
        %v267 = vunpack.c.h.b16 %v224
        %v268 = vunpack.c.l.b16 %v225
        %v269 = vunpack.c.h.b16 %v225
        %v270 = vunpack.c.l.b16 %v226
        %v271 = vunpack.c.h.b16 %v226
        %v272 = vunpack.c.l.b16 %v227
        %v273 = vunpack.c.h.b16 %v227
        %v274 = vpack.c.b16 %v268, %v266
        %v275 = vpack.c.b16 %v269, %v267
        %v276 = vpack.c.b16 %v272, %v270
        %v277 = vpack.c.b16 %v273, %v271
        %vm282 = vcmask 261120
        %v284 = vsel %vm282, %v260, 0
        %v287 = vsel %vm282, %v261, 0
        %289 = vmatprep.subr.bf16.mxu0 %v275
        %290 = vmatpush1.bf16.msra.mxu0 %v274
        %291 = vmatprep.subr.bf16.mxu0 %v277
        %292 = vmatpush1.bf16.msra.mxu0 %v276
        %293 = vmatprep.subr.bf16.mxu0 0
        %294 = vmatpush1.bf16.msra.mxu0 0
        %295 = vmatprep.subr.bf16.mxu0 0
        %296 = vmatpush1.bf16.msra.mxu0 0
        %297 = vmatprep.subr.bf16.mxu0 0
        %298 = vmatpush1.bf16.msra.mxu0 0
        %299 = vmatprep.subr.bf16.mxu0 0
        %300 = vmatpush1.bf16.msra.mxu0 0
        %301 = vmatprep.subr.bf16.mxu0 0
        %302 = vmatpush1.bf16.msra.mxu0 0
        %303 = vmatprep.subr.bf16.mxu0 0
        %304 = vmatpush1.bf16.msra.mxu0 0
        %305 = vmatprep.subr.bf16.mxu0 0
        %306 = vmatpush1.bf16.msra.mxu0 0
        %307 = vmatprep.subr.bf16.mxu0 0
        %308 = vmatpush1.bf16.msra.mxu0 0
        %309 = vmatprep.subr.bf16.mxu0 0
        %310 = vmatpush1.bf16.msra.mxu0 0
        %311 = vmatprep.subr.bf16.mxu0 0
        %312 = vmatpush1.bf16.msra.mxu0 0
        %313 = vmatprep.subr.bf16.mxu0 0
        %314 = vmatpush1.bf16.msra.mxu0 0
        %315 = vmatprep.subr.bf16.mxu0 0
        %316 = vmatpush1.bf16.msra.mxu0 0
        %317 = vmatprep.subr.bf16.mxu0 0
        %318 = vmatpush1.bf16.msra.mxu0 0
        %319 = vmatprep.subr.bf16.mxu0 0
        %320 = vmatpush1.bf16.msra.mxu0 0
        %321 = vmatprep.mubr.bf16.mxu0 0
        %322 = vmatmul.mubr.bf16.gmra.mrb[0].mxu0 %v284
        %v323 = vpop.f32.mrb[0].mxu0
        %v324 = vadd.f32 %v235, %v323
        %v325 = vpop.f32.mrb[0].mxu0
        %v326 = vadd.f32 %v235, %v325
        %v327 = vpop.f32.mrb[0].mxu0
        %v328 = vadd.f32 %v240, %v327
        %v329 = vpop.f32.mrb[0].mxu0
        %v330 = vadd.f32 %v240, %v329
        %331 = vmatprep.mubr.bf16.mxu0 0
        %332 = vmatmul.mubr.bf16.gmra.mrb[0].mxu0 %v287
        %v333 = vpop.f32.mrb[0].mxu0
        %v334 = vadd.f32 %v245, %v333
        %v335 = vpop.f32.mrb[0].mxu0
        %v336 = vadd.f32 %v245, %v335
        %v337 = vpop.f32.mrb[0].mxu0
        %v338 = vadd.f32 %v250, %v337
        %v339 = vpop.f32.mrb[0].mxu0
        %v340 = vadd.f32 %v250, %v339
        %341 = vdwg.mxu0
        %342 = vst [vmem:[%s217] sm:$0xff] %v324
        %343 = vst [vmem:[%s217 + $0x8] sm:$0xff] %v326
        %344 = vst [vmem:[%s217 + $0x10] sm:$0xff] %v328
        %345 = vst [vmem:[%s217 + $0x18] sm:$0xff] %v330
        %346 = vst [vmem:[%s217 + $0x20] sm:$0xff] %v334
        %347 = vst [vmem:[%s217 + $0x28] sm:$0xff] %v336
        %348 = vst [vmem:[%s217 + $0x30] sm:$0x3] %v338
        %349 = vst [vmem:[%s217 + $0x38] sm:$0x3] %v340
        %s350 = smul.u32 2, %s22
        %p351 = scmp.lt.s32.totalorder %s21, 1
        %s352 = scalar_select %p351, %s21, 1
        %p353 = scmp.lt.s32.totalorder %s350, 1
        %s354 = scalar_select %p353, %s350, 1
        %s355 = smul.addr %s352, 8
        %s356 = sadd.s32 %s354, %s355
        %s357 = smul.addr %s356, 8
        %s358 = scalar_lea.vmem %s3, %s357
        // Predicated region
        $region37: #{tpu_custom_call.1} parent=31 // pred_check
          %p359 = pneg %p119
        $region38: #{tpu_custom_call.1} parent=31 // pred_check_branch
          %361 = sbr.rel (%p359) target = $region40
        $region39: #{tpu_custom_call.1} parent=31 // pred_region
          %s362 = smul.u32 2, %s22
        $region40: #{tpu_custom_call.1} parent=31 // pred_fallthru
          _
      $region32: #{tpu_custom_call.1} parent=5 // pred_fallthru
        _
      %p363 = scmp.le.s32.totalorder 2, %s12
      // Predicated region
      $region41: #{tpu_custom_call.1} parent=5 // pred_check
        %p364 = pneg %p363
      $region42: #{tpu_custom_call.1} parent=5 // pred_check_branch
        %366 = sbr.rel (%p364) target = $region44
      $region43: #{tpu_custom_call.1} parent=5 // pred_region
        %s367 = ssub.s32 %s12, 2
        // Predicated region
        $region45: #{tpu_custom_call.1} parent=43 // pred_check
          %p368 = pneg %p125
        $region46: #{tpu_custom_call.1} parent=43 // pred_check_branch
          %370 = sbr.rel (%p368) target = $region48
        $region47: #{tpu_custom_call.1} parent=43 // pred_region
          %s371 = smul.u32 2, %s24
          %p372 = scmp.lt.s32.totalorder %s23, 1
          %s373 = scalar_select %p372, %s23, 1
          %p374 = scmp.lt.s32.totalorder %s371, 1
          %s375 = scalar_select %p374, %s371, 1
          %s376 = smul.addr %s373, 8
          %s377 = sadd.s32 %s375, %s376
          %s378 = smul.addr %s377, 8
          %s379 = scalar_lea.vmem %s3, %s378
        $region48: #{tpu_custom_call.1} parent=43 // pred_fallthru
          _
      $region44: #{tpu_custom_call.1} parent=5 // pred_fallthru
        _
    $region6: #{tpu_custom_call.1} parent=1 // loop_footer
      %s16 = sadd.s32 1, %s12
    $region7: #{tpu_custom_call.1} parent=1 // loop_footer_branch
      %11 = sbr.rel target = $region3
    $region8: #{tpu_custom_call.1} parent=1 // loop_exit
      _
    %380 = vsyncpa [#allocation3], 1
    %s381 = scalar_lea.sflag [#allocation3], 1
    %382 = vsyncpa %s381, 1

</llo_original>
